<compile_context>
chip_gen: v5e
topology: v5e:2x2
jax: 0.10.0
libtpu: 0.0.40
codegen_flags: <defaults>
</compile_context>

<pallas_src>
import math
import numpy as np
import jax
import jax.numpy as jnp
from jax.experimental import pallas as pl
from jax.experimental.pallas import tpu as pltpu


# -------------------- noise schedule (host glue, numpy float64) --------------------
def make_beta_schedule(schedule, n_timestep, linear_start=1e-4, linear_end=2e-2):
    if schedule == 'linear':
        betas = np.linspace(linear_start, linear_end, n_timestep, dtype=np.float64)
    elif schedule == 'quad':
        betas = np.linspace(linear_start ** 0.5, linear_end ** 0.5,
                            n_timestep, dtype=np.float64) ** 2
    else:
        raise NotImplementedError(schedule)
    return betas


def set_new_noise_schedule(schedule_opt):
    betas = make_beta_schedule(schedule=schedule_opt['schedule'],
                               n_timestep=schedule_opt['n_timestep'],
                               linear_start=schedule_opt['linear_start'],
                               linear_end=schedule_opt['linear_end'])
    alphas = 1.0 - betas
    alphas_cumprod = np.cumprod(alphas, axis=0)
    sqrt_alphas_cumprod_prev = np.sqrt(np.append(1.0, alphas_cumprod))
    return {
        'num_timesteps': int(betas.shape[0]),
        'sqrt_alphas_cumprod_prev': sqrt_alphas_cumprod_prev,
    }


# -------------------- packed scalar-parameter layout (SMEM) --------------------
_WP0, _WP1 = 0, 3                 # wp[0,:], wp[1,:]
_BP = 6                           # bp
_WXN0, _WXN1, _WXN2 = 9, 12, 15   # w_xn rows
_W2D0, _W2D1 = 18, 21             # folded 2D-conditioning weight rows
_WNL = 24                         # noise-level weight
_BEFF = 27                        # folded bias
_A, _B = 30, 31                   # 1/gamma, sqrt(1/gamma^2 - 1)
_NPARAMS = 32

_LANES = 128


# -------------------- fused Pallas kernel --------------------
def _make_kernel(ts, lanes, m_valid):
    """ts: sublanes per tile, lanes: 128, m_valid: number of real rows (static)."""

    def kernel(params_ref, x_ref, out_ref, ln_ref, lr_ref):
        i = pl.program_id(0)

        def p(k):                       # scalar weight from SMEM
            return params_ref[k]

        # channel slices, each a dense (ts, 128) tile
        gt = (x_ref[0], x_ref[1], x_ref[2])
        u, v = x_ref[3], x_ref[4]
        noise = (x_ref[5], x_ref[6], x_ref[7])
        csac = x_ref[8]

        sig = jnp.sqrt(1.0 - csac * csac)   # sqrt(1 - csac^2), hoisted once
        a = p(_A)
        bc = p(_B)

        # ---- fused regressor (preds) + gt_res + q_sample, all VPU FMAs ----
        preds, gt_res, x_noisy = [], [], []
        for c in range(3):
            pr = p(_WP0 + c) * u + p(_WP1 + c) * v + p(_BP + c)
            rs = gt[c] - pr                                  # norm_res = False
            xn = csac * rs + sig * noise[c]                  # q_sample
            preds.append(pr)
            gt_res.append(rs)
            x_noisy.append(xn)
            out_ref[0 + c] = pr                              # preds channels
            out_ref[9 + c] = rs                              # gt_res channels

        # ---- denoise_fn (folded linear) + predict_start_from_noise_continuous ----
        err_n_terms, err_r_terms = [], []
        for c in range(3):
            xr = (p(_WXN0 + c) * x_noisy[0]
                  + p(_WXN1 + c) * x_noisy[1]
                  + p(_WXN2 + c) * x_noisy[2]
                  + p(_W2D0 + c) * u + p(_W2D1 + c) * v
                  + p(_WNL + c) * csac + p(_BEFF + c))
            rr = a * x_noisy[c] - bc * xr                    # global gamma
            out_ref[3 + c] = xr                              # pred_noise channels
            out_ref[6 + c] = rr                              # res_recon channels
            dn = xr - noise[c]
            dr = rr - gt_res[c]
            err_n_terms.append(dn * dn)
            err_r_terms.append(dr * dr)

        err_n = err_n_terms[0] + err_n_terms[1] + err_n_terms[2]
        err_r = err_r_terms[0] + err_r_terms[1] + err_r_terms[2]

        # ---- validity mask for padded tail rows (no streamed mask input) ----
        rows = jax.lax.broadcasted_iota(jnp.int32, (ts, lanes), 0)
        cols = jax.lax.broadcasted_iota(jnp.int32, (ts, lanes), 1)
        gidx = (i * ts + rows) * lanes + cols
        valid = (gidx < m_valid).astype(jnp.float32)

        ln_ref[0] = jnp.sum(err_n * valid, keepdims=True)    # (1,1) per-tile partial
        lr_ref[0] = jnp.sum(err_r * valid, keepdims=True)

    return kernel


# -------------------- wrapper --------------------
def _round_up(x, m):
    return ((x + m - 1) // m) * m


def fused_diffusion_pallas(gt_flat, x2d_flat, noise, csac, a_coef, b_coef,
                           reg_params, dn_params, *, ts_target=128):
    """Single pallas_call over a row-tile grid. Returns preds, pred_noise,
    res_recon, gt_res (all [M,3]) and the two global MSE losses."""
    M = gt_flat.shape[0]
    hi = jax.lax.Precision.HIGHEST

    # ---- fold the linear feature / conditioning path into effective weights ----
    wp, bp = reg_params['wp'], reg_params['bp']
    wf, bf = reg_params['wf'], reg_params['bf']
    w_xn, w_sf = dn_params['w_xn'], dn_params['w_sf']
    w_cp, w_2d = dn_params['w_cp'], dn_params['w_2d']
    w_nl, b = dn_params['w_nl'], dn_params['b']
    w_2d_eff = (jnp.dot(wf, w_sf, precision=hi)
                + jnp.dot(wp, w_cp, precision=hi) + w_2d)          # (2, 3)
    b_eff = (jnp.dot(bf, w_sf, precision=hi)
             + jnp.dot(bp, w_cp, precision=hi) + b)                # (1, 3)

    params = jnp.concatenate([
        wp.reshape(-1), bp.reshape(-1),
        w_xn.reshape(-1), w_2d_eff.reshape(-1),
        w_nl.reshape(-1), b_eff.reshape(-1),
        jnp.asarray([a_coef, b_coef], dtype=jnp.float32),
    ]).astype(jnp.float32)
    assert params.shape[0] == _NPARAMS

    # ---- tiling: rows packed as (S sublanes, 128 lanes) ----
    S = max(1, -(-M // _LANES))
    S8 = _round_up(S, 8)
    TS = min(_round_up(ts_target, 8), S8)
    if S8 // TS < 2 and S8 >= 16:          # give v7x's second TensorCore work
        TS = _round_up(-(-S8 // 2), 8)
    S_pad = _round_up(S8, TS)
    num_tiles = S_pad // TS
    M_pad = S_pad * _LANES

    # ---- channel-major lane-dense input slab [9, S_pad, 128] ----
    in_rows = jnp.concatenate(
        [gt_flat, x2d_flat, noise, csac], axis=1).astype(jnp.float32)   # (M, 9)
    in_slab = jnp.transpose(in_rows)                                    # (9, M)
    in_slab = jnp.pad(in_slab, ((0, 0), (0, M_pad - M)))
    in_slab = in_slab.reshape(9, S_pad, _LANES)

    kernel = _make_kernel(TS, _LANES, M)

    bytes_accessed = 4 * M_pad * (9 + 12) + 4 * _NPARAMS + 8 * num_tiles
    cost = pl.CostEstimate(flops=int(120 * M_pad),
                           transcendentals=int(M_pad),
                           bytes_accessed=int(bytes_accessed))

    out_slab, ln_part, lr_part = pl.pallas_call(
        kernel,
        grid=(num_tiles,),
        in_specs=[
            pl.BlockSpec(memory_space=pltpu.MemorySpace.SMEM),           # packed scalars
            pl.BlockSpec((9, TS, _LANES), lambda i: (0, i, 0)),          # input slab
        ],
        out_shape=(
            jax.ShapeDtypeStruct((12, S_pad, _LANES), jnp.float32),      # output slab
            jax.ShapeDtypeStruct((num_tiles, 1, 1), jnp.float32),        # noise-mse partials
            jax.ShapeDtypeStruct((num_tiles, 1, 1), jnp.float32),        # res-mse partials
        ),
        out_specs=(
            pl.BlockSpec((12, TS, _LANES), lambda i: (0, i, 0)),
            pl.BlockSpec((1, 1, 1), lambda i: (i, 0, 0)),
            pl.BlockSpec((1, 1, 1), lambda i: (i, 0, 0)),
        ),
        compiler_params=pltpu.CompilerParams(
            dimension_semantics=("parallel",)),
        cost_estimate=cost,
    )(params, in_slab)

    out_flat = out_slab.reshape(12, M_pad)[:, :M]
    preds = jnp.transpose(out_flat[0:3])        # (M, 3)
    pred_noise = jnp.transpose(out_flat[3:6])
    res_recon = jnp.transpose(out_flat[6:9])
    gt_res = jnp.transpose(out_flat[9:12])

    denom = jnp.float32(M * 3)
    loss_noise = jnp.sum(ln_part) / denom
    loss_res = jnp.sum(lr_part) / denom
    return preds, pred_noise, res_recon, gt_res, loss_noise, loss_res


def gaussian_diffusion_forward(inputs_2d, gt, reg_params, dn_params,
                               schedule, np_rng, noise_key):
    """Mirrors GaussianDiffusion.forward for diff_on=True, predict_x_start=False,
    norm_res=False, condition_on_preds=True, condition_on_2d=True,
    cond_drop_prob=0.0."""
    b, f, n, _ = gt.shape
    M = b * f * n

    x2d_flat = inputs_2d.reshape(M, 2).astype(jnp.float32)
    gt_flat = gt.reshape(M, 3).astype(jnp.float32)

    # --- diffuse(): sample t and continuous sqrt(alpha_cumprod) (host-side RNG) ---
    num_timesteps = schedule['num_timesteps']
    sqrt_acp = schedule['sqrt_alphas_cumprod_prev']
    t = int(np_rng.integers(1, num_timesteps + 1))
    # sqrt_alphas_cumprod_prev is decreasing in t; order bounds for Generator.uniform
    lo = float(min(sqrt_acp[t - 1], sqrt_acp[t]))
    hi = float(max(sqrt_acp[t - 1], sqrt_acp[t]))
    csac_bf = np_rng.uniform(lo, hi, size=b * f).astype(np.float32)
    # unsqueeze(-1).repeat(1, num_kps).unsqueeze(-1) -> flat [M, 1]
    csac = jnp.asarray(np.repeat(csac_bf[:, None], n, axis=1).reshape(M, 1))

    # gamma = continuous_sqrt_alpha_cumprod.view(-1)[0]  (GLOBAL first element)
    gamma = float(csac_bf[0])
    a_coef = 1.0 / gamma
    b_coef = math.sqrt(max(1.0 / (gamma * gamma) - 1.0, 0.0))

    noise = jax.random.normal(noise_key, (M, 3), dtype=jnp.float32)

    (preds_flat, pred_noise, res_recon, gt_res, loss_noise, loss_res) = \
        fused_diffusion_pallas(gt_flat, x2d_flat, noise, csac, a_coef, b_coef,
                               reg_params, dn_params)

    # regress() runs under torch.no_grad(); conditioning uses preds.detach()
    preds_flat = jax.lax.stop_gradient(preds_flat)

    losses = {
        'noise_mse': loss_noise,
        'res_mse': loss_res,
        'total': loss_noise + loss_res,
    }
    aux = {
        'pred_noise': pred_noise.reshape(b, f, n, 3),
        'gt_noise': noise.reshape(b, f, n, 3),
        'res_recon': res_recon.reshape(b, f, n, 3),
        'gt_res': gt_res.reshape(b, f, n, 3),
        'preds': preds_flat.reshape(b, f, n, 3),
        'csac': csac,
        'gamma': gamma,
    }
    return losses, aux


# -------------------- main --------------------
if __name__ == "__main__":
    B, F, N, H = 2, 4, 8, 32    # batch, frames, keypoints, st_feats hidden dim
    M = B * F * N

    key = jax.random.PRNGKey(0)
    (k_in2d, k_gt, k_wp, k_wf, k_wxn, k_wsf, k_wcp, k_w2d, k_wnl, k_noise) = \
        jax.random.split(key, 10)

    inputs_2d = jax.random.normal(k_in2d, (B, F, N, 2), dtype=jnp.float32)
    gt = jax.random.normal(k_gt, (B, F, N, 3), dtype=jnp.float32)

    reg_params = {
        'wp': 0.1 * jax.random.normal(k_wp, (2, 3), dtype=jnp.float32),
        'bp': jnp.zeros((1, 3), dtype=jnp.float32),
        'wf': 0.1 * jax.random.normal(k_wf, (2, H), dtype=jnp.float32),
        'bf': jnp.zeros((1, H), dtype=jnp.float32),
    }
    dn_params = {
        'w_xn': 0.1 * jax.random.normal(k_wxn, (3, 3), dtype=jnp.float32),
        'w_sf': 0.1 * jax.random.normal(k_wsf, (H, 3), dtype=jnp.float32),
        'w_cp': 0.1 * jax.random.normal(k_wcp, (3, 3), dtype=jnp.float32),
        'w_2d': 0.1 * jax.random.normal(k_w2d, (2, 3), dtype=jnp.float32),
        'w_nl': 0.1 * jax.random.normal(k_wnl, (1, 3), dtype=jnp.float32),
        'b': jnp.zeros((1, 3), dtype=jnp.float32),
    }

    schedule = set_new_noise_schedule(
        {'schedule': 'linear', 'n_timestep': 100,
         'linear_start': 1e-4, 'linear_end': 2e-2})

    np_rng = np.random.default_rng(0)

    losses, aux = gaussian_diffusion_forward(
        inputs_2d, gt, reg_params, dn_params, schedule, np_rng, k_noise)

    jax.block_until_ready(losses['total'])
    jax.block_until_ready(aux['res_recon'])

    # ---- pure-JAX reference (unfused path, mirrors the torch math) ----
    hi = jax.lax.Precision.HIGHEST
    x2d_flat = inputs_2d.reshape(M, 2)
    gt_flat = gt.reshape(M, 3)
    csac = aux['csac']
    noise = aux['gt_noise'].reshape(M, 3)
    gamma = aux['gamma']
    preds_r = jnp.dot(x2d_flat, reg_params['wp'], precision=hi) + reg_params['bp']
    feats_r = jnp.dot(x2d_flat, reg_params['wf'], precision=hi) + reg_params['bf']
    gt_res_r = gt_flat - preds_r
    x_noisy_r = csac * gt_res_r + jnp.sqrt(1.0 - csac * csac) * noise
    x_recon_r = (jnp.dot(x_noisy_r, dn_params['w_xn'], precision=hi)
                 + jnp.dot(feats_r, dn_params['w_sf'], precision=hi)
                 + jnp.dot(preds_r, dn_params['w_cp'], precision=hi)
                 + jnp.dot(x2d_flat, dn_params['w_2d'], precision=hi)
                 + csac * dn_params['w_nl'] + dn_params['b'])
    a_r = 1.0 / gamma
    b_r = math.sqrt(max(1.0 / (gamma * gamma) - 1.0, 0.0))
    res_recon_r = a_r * x_noisy_r - b_r * x_recon_r

    np.testing.assert_allclose(np.asarray(aux['pred_noise'].reshape(M, 3)),
                               np.asarray(x_recon_r), rtol=1e-3, atol=1e-3)
    np.testing.assert_allclose(np.asarray(aux['res_recon'].reshape(M, 3)),
                               np.asarray(res_recon_r), rtol=1e-3, atol=1e-3)
    np.testing.assert_allclose(np.asarray(aux['gt_res'].reshape(M, 3)),
                               np.asarray(gt_res_r), rtol=1e-3, atol=1e-3)
    np.testing.assert_allclose(float(losses['noise_mse']),
                               float(jnp.mean((x_recon_r - noise) ** 2)),
                               rtol=1e-3, atol=1e-4)
    np.testing.assert_allclose(float(losses['res_mse']),
                               float(jnp.mean((res_recon_r - gt_res_r) ** 2)),
                               rtol=1e-3, atol=1e-4)

    assert aux['pred_noise'].shape == (B, F, N, 3)
    assert aux['res_recon'].shape == (B, F, N, 3)
    assert aux['preds'].shape == (B, F, N, 3)
    assert np.isfinite(float(losses['total']))

    print("KERNEL_OK")
</pallas_src>

<mosaic_0001>
module attributes {stable_mosaic.version = 11 : i64} {
  func.func @kernel(%arg0: i32, %arg1: memref<32xf32, #tpu.memory_space<smem>>, %arg2: memref<9x8x128xf32, #tpu.memory_space<vmem>>, %arg3: memref<12x8x128xf32, #tpu.memory_space<vmem>>, %arg4: memref<1x1x1xf32, #tpu.memory_space<vmem>>, %arg5: memref<1x1x1xf32, #tpu.memory_space<vmem>>) attributes {dimension_semantics = [#tpu.dimension_semantics<parallel>], iteration_bounds = array<i64: 1>, scalar_prefetch = 0 : i64, scratch_operands = 0 : i64, tpu.core_type = #tpu.core_type<tc>, window_params = [{transform_indices = @transform_0, window_bounds = array<i64: 32>}, {transform_indices = @transform_1, window_bounds = array<i64: 9, 8, 128>}, {transform_indices = @transform_2, window_bounds = array<i64: 12, 8, 128>}, {transform_indices = @transform_3, window_bounds = array<i64: 1, 1, 1>}, {transform_indices = @transform_4, window_bounds = array<i64: 1, 1, 1>}]} {
    %c0 = arith.constant 0 : index
    %c0_0 = arith.constant 0 : index
    %c0_1 = arith.constant 0 : index
    %0 = vector.load %arg2[%c0, %c0_0, %c0_1] : memref<9x8x128xf32, #tpu.memory_space<vmem>>, vector<1x8x128xf32>
    %1 = vector.shape_cast %0 : vector<1x8x128xf32> to vector<8x128xf32>
    %c1 = arith.constant 1 : index
    %c0_2 = arith.constant 0 : index
    %c0_3 = arith.constant 0 : index
    %2 = vector.load %arg2[%c1, %c0_2, %c0_3] : memref<9x8x128xf32, #tpu.memory_space<vmem>>, vector<1x8x128xf32>
    %3 = vector.shape_cast %2 : vector<1x8x128xf32> to vector<8x128xf32>
    %c2 = arith.constant 2 : index
    %c0_4 = arith.constant 0 : index
    %c0_5 = arith.constant 0 : index
    %4 = vector.load %arg2[%c2, %c0_4, %c0_5] : memref<9x8x128xf32, #tpu.memory_space<vmem>>, vector<1x8x128xf32>
    %5 = vector.shape_cast %4 : vector<1x8x128xf32> to vector<8x128xf32>
    %c3 = arith.constant 3 : index
    %c0_6 = arith.constant 0 : index
    %c0_7 = arith.constant 0 : index
    %6 = vector.load %arg2[%c3, %c0_6, %c0_7] : memref<9x8x128xf32, #tpu.memory_space<vmem>>, vector<1x8x128xf32>
    %7 = vector.shape_cast %6 : vector<1x8x128xf32> to vector<8x128xf32>
    %c4 = arith.constant 4 : index
    %c0_8 = arith.constant 0 : index
    %c0_9 = arith.constant 0 : index
    %8 = vector.load %arg2[%c4, %c0_8, %c0_9] : memref<9x8x128xf32, #tpu.memory_space<vmem>>, vector<1x8x128xf32>
    %9 = vector.shape_cast %8 : vector<1x8x128xf32> to vector<8x128xf32>
    %c5 = arith.constant 5 : index
    %c0_10 = arith.constant 0 : index
    %c0_11 = arith.constant 0 : index
    %10 = vector.load %arg2[%c5, %c0_10, %c0_11] : memref<9x8x128xf32, #tpu.memory_space<vmem>>, vector<1x8x128xf32>
    %11 = vector.shape_cast %10 : vector<1x8x128xf32> to vector<8x128xf32>
    %c6 = arith.constant 6 : index
    %c0_12 = arith.constant 0 : index
    %c0_13 = arith.constant 0 : index
    %12 = vector.load %arg2[%c6, %c0_12, %c0_13] : memref<9x8x128xf32, #tpu.memory_space<vmem>>, vector<1x8x128xf32>
    %13 = vector.shape_cast %12 : vector<1x8x128xf32> to vector<8x128xf32>
    %c7 = arith.constant 7 : index
    %c0_14 = arith.constant 0 : index
    %c0_15 = arith.constant 0 : index
    %14 = vector.load %arg2[%c7, %c0_14, %c0_15] : memref<9x8x128xf32, #tpu.memory_space<vmem>>, vector<1x8x128xf32>
    %15 = vector.shape_cast %14 : vector<1x8x128xf32> to vector<8x128xf32>
    %c8 = arith.constant 8 : index
    %c0_16 = arith.constant 0 : index
    %c0_17 = arith.constant 0 : index
    %16 = vector.load %arg2[%c8, %c0_16, %c0_17] : memref<9x8x128xf32, #tpu.memory_space<vmem>>, vector<1x8x128xf32>
    %17 = vector.shape_cast %16 : vector<1x8x128xf32> to vector<8x128xf32>
    %18 = arith.mulf %17, %17 : vector<8x128xf32>
    %cst = arith.constant 1.000000e+00 : f32
    %19 = vector.broadcast %cst : f32 to vector<8x128xf32>
    %20 = arith.subf %19, %18 : vector<8x128xf32>
    %21 = math.sqrt %20 : vector<8x128xf32>
    %c30 = arith.constant 30 : index
    %22 = memref.load %arg1[%c30] : memref<32xf32, #tpu.memory_space<smem>>
    %c31 = arith.constant 31 : index
    %23 = memref.load %arg1[%c31] : memref<32xf32, #tpu.memory_space<smem>>
    %c0_18 = arith.constant 0 : index
    %24 = memref.load %arg1[%c0_18] : memref<32xf32, #tpu.memory_space<smem>>
    %25 = vector.broadcast %24 : f32 to vector<8x128xf32>
    %26 = arith.mulf %25, %7 : vector<8x128xf32>
    %c3_19 = arith.constant 3 : index
    %27 = memref.load %arg1[%c3_19] : memref<32xf32, #tpu.memory_space<smem>>
    %28 = vector.broadcast %27 : f32 to vector<8x128xf32>
    %29 = arith.mulf %28, %9 : vector<8x128xf32>
    %30 = arith.addf %26, %29 : vector<8x128xf32>
    %c6_20 = arith.constant 6 : index
    %31 = memref.load %arg1[%c6_20] : memref<32xf32, #tpu.memory_space<smem>>
    %32 = vector.broadcast %31 : f32 to vector<8x128xf32>
    %33 = arith.addf %30, %32 : vector<8x128xf32>
    %34 = arith.subf %1, %33 : vector<8x128xf32>
    %35 = arith.mulf %17, %34 : vector<8x128xf32>
    %36 = arith.mulf %21, %11 : vector<8x128xf32>
    %37 = arith.addf %35, %36 : vector<8x128xf32>
    %c0_21 = arith.constant 0 : index
    %c0_22 = arith.constant 0 : index
    %c0_23 = arith.constant 0 : index
    %38 = vector.load %arg3[%c0_21, %c0_22, %c0_23] : memref<12x8x128xf32, #tpu.memory_space<vmem>>, vector<1x8x128xf32>
    %39 = vector.shape_cast %38 : vector<1x8x128xf32> to vector<8x128xf32>
    %40 = vector.shape_cast %33 : vector<8x128xf32> to vector<1x8x128xf32>
    tpu.vector_store %arg3[%c0_21, %c0_22, %c0_23], %40 {strides = array<i32>} : memref<12x8x128xf32, #tpu.memory_space<vmem>>, vector<1x8x128xf32>,
    %c9 = arith.constant 9 : index
    %c0_24 = arith.constant 0 : index
    %c0_25 = arith.constant 0 : index
    %41 = vector.load %arg3[%c9, %c0_24, %c0_25] : memref<12x8x128xf32, #tpu.memory_space<vmem>>, vector<1x8x128xf32>
    %42 = vector.shape_cast %41 : vector<1x8x128xf32> to vector<8x128xf32>
    %43 = vector.shape_cast %34 : vector<8x128xf32> to vector<1x8x128xf32>
    tpu.vector_store %arg3[%c9, %c0_24, %c0_25], %43 {strides = array<i32>} : memref<12x8x128xf32, #tpu.memory_space<vmem>>, vector<1x8x128xf32>,
    %c1_26 = arith.constant 1 : index
    %44 = memref.load %arg1[%c1_26] : memref<32xf32, #tpu.memory_space<smem>>
    %45 = vector.broadcast %44 : f32 to vector<8x128xf32>
    %46 = arith.mulf %45, %7 : vector<8x128xf32>
    %c4_27 = arith.constant 4 : index
    %47 = memref.load %arg1[%c4_27] : memref<32xf32, #tpu.memory_space<smem>>
    %48 = vector.broadcast %47 : f32 to vector<8x128xf32>
    %49 = arith.mulf %48, %9 : vector<8x128xf32>
    %50 = arith.addf %46, %49 : vector<8x128xf32>
    %c7_28 = arith.constant 7 : index
    %51 = memref.load %arg1[%c7_28] : memref<32xf32, #tpu.memory_space<smem>>
    %52 = vector.broadcast %51 : f32 to vector<8x128xf32>
    %53 = arith.addf %50, %52 : vector<8x128xf32>
    %54 = arith.subf %3, %53 : vector<8x128xf32>
    %55 = arith.mulf %17, %54 : vector<8x128xf32>
    %56 = arith.mulf %21, %13 : vector<8x128xf32>
    %57 = arith.addf %55, %56 : vector<8x128xf32>
    %c1_29 = arith.constant 1 : index
    %c0_30 = arith.constant 0 : index
    %c0_31 = arith.constant 0 : index
    %58 = vector.load %arg3[%c1_29, %c0_30, %c0_31] : memref<12x8x128xf32, #tpu.memory_space<vmem>>, vector<1x8x128xf32>
    %59 = vector.shape_cast %58 : vector<1x8x128xf32> to vector<8x128xf32>
    %60 = vector.shape_cast %53 : vector<8x128xf32> to vector<1x8x128xf32>
    tpu.vector_store %arg3[%c1_29, %c0_30, %c0_31], %60 {strides = array<i32>} : memref<12x8x128xf32, #tpu.memory_space<vmem>>, vector<1x8x128xf32>,
    %c10 = arith.constant 10 : index
    %c0_32 = arith.constant 0 : index
    %c0_33 = arith.constant 0 : index
    %61 = vector.load %arg3[%c10, %c0_32, %c0_33] : memref<12x8x128xf32, #tpu.memory_space<vmem>>, vector<1x8x128xf32>
    %62 = vector.shape_cast %61 : vector<1x8x128xf32> to vector<8x128xf32>
    %63 = vector.shape_cast %54 : vector<8x128xf32> to vector<1x8x128xf32>
    tpu.vector_store %arg3[%c10, %c0_32, %c0_33], %63 {strides = array<i32>} : memref<12x8x128xf32, #tpu.memory_space<vmem>>, vector<1x8x128xf32>,
    %c2_34 = arith.constant 2 : index
    %64 = memref.load %arg1[%c2_34] : memref<32xf32, #tpu.memory_space<smem>>
    %65 = vector.broadcast %64 : f32 to vector<8x128xf32>
    %66 = arith.mulf %65, %7 : vector<8x128xf32>
    %c5_35 = arith.constant 5 : index
    %67 = memref.load %arg1[%c5_35] : memref<32xf32, #tpu.memory_space<smem>>
    %68 = vector.broadcast %67 : f32 to vector<8x128xf32>
    %69 = arith.mulf %68, %9 : vector<8x128xf32>
    %70 = arith.addf %66, %69 : vector<8x128xf32>
    %c8_36 = arith.constant 8 : index
    %71 = memref.load %arg1[%c8_36] : memref<32xf32, #tpu.memory_space<smem>>
    %72 = vector.broadcast %71 : f32 to vector<8x128xf32>
    %73 = arith.addf %70, %72 : vector<8x128xf32>
    %74 = arith.subf %5, %73 : vector<8x128xf32>
    %75 = arith.mulf %17, %74 : vector<8x128xf32>
    %76 = arith.mulf %21, %15 : vector<8x128xf32>
    %77 = arith.addf %75, %76 : vector<8x128xf32>
    %c2_37 = arith.constant 2 : index
    %c0_38 = arith.constant 0 : index
    %c0_39 = arith.constant 0 : index
    %78 = vector.load %arg3[%c2_37, %c0_38, %c0_39] : memref<12x8x128xf32, #tpu.memory_space<vmem>>, vector<1x8x128xf32>
    %79 = vector.shape_cast %78 : vector<1x8x128xf32> to vector<8x128xf32>
    %80 = vector.shape_cast %73 : vector<8x128xf32> to vector<1x8x128xf32>
    tpu.vector_store %arg3[%c2_37, %c0_38, %c0_39], %80 {strides = array<i32>} : memref<12x8x128xf32, #tpu.memory_space<vmem>>, vector<1x8x128xf32>,
    %c11 = arith.constant 11 : index
    %c0_40 = arith.constant 0 : index
    %c0_41 = arith.constant 0 : index
    %81 = vector.load %arg3[%c11, %c0_40, %c0_41] : memref<12x8x128xf32, #tpu.memory_space<vmem>>, vector<1x8x128xf32>
    %82 = vector.shape_cast %81 : vector<1x8x128xf32> to vector<8x128xf32>
    %83 = vector.shape_cast %74 : vector<8x128xf32> to vector<1x8x128xf32>
    tpu.vector_store %arg3[%c11, %c0_40, %c0_41], %83 {strides = array<i32>} : memref<12x8x128xf32, #tpu.memory_space<vmem>>, vector<1x8x128xf32>,
    %c9_42 = arith.constant 9 : index
    %84 = memref.load %arg1[%c9_42] : memref<32xf32, #tpu.memory_space<smem>>
    %85 = vector.broadcast %84 : f32 to vector<8x128xf32>
    %86 = arith.mulf %85, %37 : vector<8x128xf32>
    %c12 = arith.constant 12 : index
    %87 = memref.load %arg1[%c12] : memref<32xf32, #tpu.memory_space<smem>>
    %88 = vector.broadcast %87 : f32 to vector<8x128xf32>
    %89 = arith.mulf %88, %57 : vector<8x128xf32>
    %90 = arith.addf %86, %89 : vector<8x128xf32>
    %c15 = arith.constant 15 : index
    %91 = memref.load %arg1[%c15] : memref<32xf32, #tpu.memory_space<smem>>
    %92 = vector.broadcast %91 : f32 to vector<8x128xf32>
    %93 = arith.mulf %92, %77 : vector<8x128xf32>
    %94 = arith.addf %90, %93 : vector<8x128xf32>
    %c18 = arith.constant 18 : index
    %95 = memref.load %arg1[%c18] : memref<32xf32, #tpu.memory_space<smem>>
    %96 = vector.broadcast %95 : f32 to vector<8x128xf32>
    %97 = arith.mulf %96, %7 : vector<8x128xf32>
    %98 = arith.addf %94, %97 : vector<8x128xf32>
    %c21 = arith.constant 21 : index
    %99 = memref.load %arg1[%c21] : memref<32xf32, #tpu.memory_space<smem>>
    %100 = vector.broadcast %99 : f32 to vector<8x128xf32>
    %101 = arith.mulf %100, %9 : vector<8x128xf32>
    %102 = arith.addf %98, %101 : vector<8x128xf32>
    %c24 = arith.constant 24 : index
    %103 = memref.load %arg1[%c24] : memref<32xf32, #tpu.memory_space<smem>>
    %104 = vector.broadcast %103 : f32 to vector<8x128xf32>
    %105 = arith.mulf %104, %17 : vector<8x128xf32>
    %106 = arith.addf %102, %105 : vector<8x128xf32>
    %c27 = arith.constant 27 : index
    %107 = memref.load %arg1[%c27] : memref<32xf32, #tpu.memory_space<smem>>
    %108 = vector.broadcast %107 : f32 to vector<8x128xf32>
    %109 = arith.addf %106, %108 : vector<8x128xf32>
    %110 = vector.broadcast %22 : f32 to vector<8x128xf32>
    %111 = arith.mulf %110, %37 : vector<8x128xf32>
    %112 = vector.broadcast %23 : f32 to vector<8x128xf32>
    %113 = arith.mulf %112, %109 : vector<8x128xf32>
    %114 = arith.subf %111, %113 : vector<8x128xf32>
    %c3_43 = arith.constant 3 : index
    %c0_44 = arith.constant 0 : index
    %c0_45 = arith.constant 0 : index
    %115 = vector.load %arg3[%c3_43, %c0_44, %c0_45] : memref<12x8x128xf32, #tpu.memory_space<vmem>>, vector<1x8x128xf32>
    %116 = vector.shape_cast %115 : vector<1x8x128xf32> to vector<8x128xf32>
    %117 = vector.shape_cast %109 : vector<8x128xf32> to vector<1x8x128xf32>
    tpu.vector_store %arg3[%c3_43, %c0_44, %c0_45], %117 {strides = array<i32>} : memref<12x8x128xf32, #tpu.memory_space<vmem>>, vector<1x8x128xf32>,
    %c6_46 = arith.constant 6 : index
    %c0_47 = arith.constant 0 : index
    %c0_48 = arith.constant 0 : index
    %118 = vector.load %arg3[%c6_46, %c0_47, %c0_48] : memref<12x8x128xf32, #tpu.memory_space<vmem>>, vector<1x8x128xf32>
    %119 = vector.shape_cast %118 : vector<1x8x128xf32> to vector<8x128xf32>
    %120 = vector.shape_cast %114 : vector<8x128xf32> to vector<1x8x128xf32>
    tpu.vector_store %arg3[%c6_46, %c0_47, %c0_48], %120 {strides = array<i32>} : memref<12x8x128xf32, #tpu.memory_space<vmem>>, vector<1x8x128xf32>,
    %121 = arith.subf %109, %11 : vector<8x128xf32>
    %122 = arith.subf %114, %34 : vector<8x128xf32>
    %123 = arith.mulf %121, %121 : vector<8x128xf32>
    %124 = arith.mulf %122, %122 : vector<8x128xf32>
    %c10_49 = arith.constant 10 : index
    %125 = memref.load %arg1[%c10_49] : memref<32xf32, #tpu.memory_space<smem>>
    %126 = vector.broadcast %125 : f32 to vector<8x128xf32>
    %127 = arith.mulf %126, %37 : vector<8x128xf32>
    %c13 = arith.constant 13 : index
    %128 = memref.load %arg1[%c13] : memref<32xf32, #tpu.memory_space<smem>>
    %129 = vector.broadcast %128 : f32 to vector<8x128xf32>
    %130 = arith.mulf %129, %57 : vector<8x128xf32>
    %131 = arith.addf %127, %130 : vector<8x128xf32>
    %c16 = arith.constant 16 : index
    %132 = memref.load %arg1[%c16] : memref<32xf32, #tpu.memory_space<smem>>
    %133 = vector.broadcast %132 : f32 to vector<8x128xf32>
    %134 = arith.mulf %133, %77 : vector<8x128xf32>
    %135 = arith.addf %131, %134 : vector<8x128xf32>
    %c19 = arith.constant 19 : index
    %136 = memref.load %arg1[%c19] : memref<32xf32, #tpu.memory_space<smem>>
    %137 = vector.broadcast %136 : f32 to vector<8x128xf32>
    %138 = arith.mulf %137, %7 : vector<8x128xf32>
    %139 = arith.addf %135, %138 : vector<8x128xf32>
    %c22 = arith.constant 22 : index
    %140 = memref.load %arg1[%c22] : memref<32xf32, #tpu.memory_space<smem>>
    %141 = vector.broadcast %140 : f32 to vector<8x128xf32>
    %142 = arith.mulf %141, %9 : vector<8x128xf32>
    %143 = arith.addf %139, %142 : vector<8x128xf32>
    %c25 = arith.constant 25 : index
    %144 = memref.load %arg1[%c25] : memref<32xf32, #tpu.memory_space<smem>>
    %145 = vector.broadcast %144 : f32 to vector<8x128xf32>
    %146 = arith.mulf %145, %17 : vector<8x128xf32>
    %147 = arith.addf %143, %146 : vector<8x128xf32>
    %c28 = arith.constant 28 : index
    %148 = memref.load %arg1[%c28] : memref<32xf32, #tpu.memory_space<smem>>
    %149 = vector.broadcast %148 : f32 to vector<8x128xf32>
    %150 = arith.addf %147, %149 : vector<8x128xf32>
    %151 = vector.broadcast %22 : f32 to vector<8x128xf32>
    %152 = arith.mulf %151, %57 : vector<8x128xf32>
    %153 = vector.broadcast %23 : f32 to vector<8x128xf32>
    %154 = arith.mulf %153, %150 : vector<8x128xf32>
    %155 = arith.subf %152, %154 : vector<8x128xf32>
    %c4_50 = arith.constant 4 : index
    %c0_51 = arith.constant 0 : index
    %c0_52 = arith.constant 0 : index
    %156 = vector.load %arg3[%c4_50, %c0_51, %c0_52] : memref<12x8x128xf32, #tpu.memory_space<vmem>>, vector<1x8x128xf32>
    %157 = vector.shape_cast %156 : vector<1x8x128xf32> to vector<8x128xf32>
    %158 = vector.shape_cast %150 : vector<8x128xf32> to vector<1x8x128xf32>
    tpu.vector_store %arg3[%c4_50, %c0_51, %c0_52], %158 {strides = array<i32>} : memref<12x8x128xf32, #tpu.memory_space<vmem>>, vector<1x8x128xf32>,
    %c7_53 = arith.constant 7 : index
    %c0_54 = arith.constant 0 : index
    %c0_55 = arith.constant 0 : index
    %159 = vector.load %arg3[%c7_53, %c0_54, %c0_55] : memref<12x8x128xf32, #tpu.memory_space<vmem>>, vector<1x8x128xf32>
    %160 = vector.shape_cast %159 : vector<1x8x128xf32> to vector<8x128xf32>
    %161 = vector.shape_cast %155 : vector<8x128xf32> to vector<1x8x128xf32>
    tpu.vector_store %arg3[%c7_53, %c0_54, %c0_55], %161 {strides = array<i32>} : memref<12x8x128xf32, #tpu.memory_space<vmem>>, vector<1x8x128xf32>,
    %162 = arith.subf %150, %13 : vector<8x128xf32>
    %163 = arith.subf %155, %54 : vector<8x128xf32>
    %164 = arith.mulf %162, %162 : vector<8x128xf32>
    %165 = arith.mulf %163, %163 : vector<8x128xf32>
    %c11_56 = arith.constant 11 : index
    %166 = memref.load %arg1[%c11_56] : memref<32xf32, #tpu.memory_space<smem>>
    %167 = vector.broadcast %166 : f32 to vector<8x128xf32>
    %168 = arith.mulf %167, %37 : vector<8x128xf32>
    %c14 = arith.constant 14 : index
    %169 = memref.load %arg1[%c14] : memref<32xf32, #tpu.memory_space<smem>>
    %170 = vector.broadcast %169 : f32 to vector<8x128xf32>
    %171 = arith.mulf %170, %57 : vector<8x128xf32>
    %172 = arith.addf %168, %171 : vector<8x128xf32>
    %c17 = arith.constant 17 : index
    %173 = memref.load %arg1[%c17] : memref<32xf32, #tpu.memory_space<smem>>
    %174 = vector.broadcast %173 : f32 to vector<8x128xf32>
    %175 = arith.mulf %174, %77 : vector<8x128xf32>
    %176 = arith.addf %172, %175 : vector<8x128xf32>
    %c20 = arith.constant 20 : index
    %177 = memref.load %arg1[%c20] : memref<32xf32, #tpu.memory_space<smem>>
    %178 = vector.broadcast %177 : f32 to vector<8x128xf32>
    %179 = arith.mulf %178, %7 : vector<8x128xf32>
    %180 = arith.addf %176, %179 : vector<8x128xf32>
    %c23 = arith.constant 23 : index
    %181 = memref.load %arg1[%c23] : memref<32xf32, #tpu.memory_space<smem>>
    %182 = vector.broadcast %181 : f32 to vector<8x128xf32>
    %183 = arith.mulf %182, %9 : vector<8x128xf32>
    %184 = arith.addf %180, %183 : vector<8x128xf32>
    %c26 = arith.constant 26 : index
    %185 = memref.load %arg1[%c26] : memref<32xf32, #tpu.memory_space<smem>>
    %186 = vector.broadcast %185 : f32 to vector<8x128xf32>
    %187 = arith.mulf %186, %17 : vector<8x128xf32>
    %188 = arith.addf %184, %187 : vector<8x128xf32>
    %c29 = arith.constant 29 : index
    %189 = memref.load %arg1[%c29] : memref<32xf32, #tpu.memory_space<smem>>
    %190 = vector.broadcast %189 : f32 to vector<8x128xf32>
    %191 = arith.addf %188, %190 : vector<8x128xf32>
    %192 = vector.broadcast %22 : f32 to vector<8x128xf32>
    %193 = arith.mulf %192, %77 : vector<8x128xf32>
    %194 = vector.broadcast %23 : f32 to vector<8x128xf32>
    %195 = arith.mulf %194, %191 : vector<8x128xf32>
    %196 = arith.subf %193, %195 : vector<8x128xf32>
    %c5_57 = arith.constant 5 : index
    %c0_58 = arith.constant 0 : index
    %c0_59 = arith.constant 0 : index
    %197 = vector.load %arg3[%c5_57, %c0_58, %c0_59] : memref<12x8x128xf32, #tpu.memory_space<vmem>>, vector<1x8x128xf32>
    %198 = vector.shape_cast %197 : vector<1x8x128xf32> to vector<8x128xf32>
    %199 = vector.shape_cast %191 : vector<8x128xf32> to vector<1x8x128xf32>
    tpu.vector_store %arg3[%c5_57, %c0_58, %c0_59], %199 {strides = array<i32>} : memref<12x8x128xf32, #tpu.memory_space<vmem>>, vector<1x8x128xf32>,
    %c8_60 = arith.constant 8 : index
    %c0_61 = arith.constant 0 : index
    %c0_62 = arith.constant 0 : index
    %200 = vector.load %arg3[%c8_60, %c0_61, %c0_62] : memref<12x8x128xf32, #tpu.memory_space<vmem>>, vector<1x8x128xf32>
    %201 = vector.shape_cast %200 : vector<1x8x128xf32> to vector<8x128xf32>
    %202 = vector.shape_cast %196 : vector<8x128xf32> to vector<1x8x128xf32>
    tpu.vector_store %arg3[%c8_60, %c0_61, %c0_62], %202 {strides = array<i32>} : memref<12x8x128xf32, #tpu.memory_space<vmem>>, vector<1x8x128xf32>,
    %203 = arith.subf %191, %15 : vector<8x128xf32>
    %204 = arith.subf %196, %74 : vector<8x128xf32>
    %205 = arith.mulf %203, %203 : vector<8x128xf32>
    %206 = arith.mulf %204, %204 : vector<8x128xf32>
    %207 = arith.addf %123, %164 : vector<8x128xf32>
    %208 = arith.addf %207, %205 : vector<8x128xf32>
    %209 = arith.addf %124, %165 : vector<8x128xf32>
    %210 = arith.addf %209, %206 : vector<8x128xf32>
    %211 = tpu.iota {dimensions = array<i32: 0>} : vector<8x128xi32>
    %212 = tpu.iota {dimensions = array<i32: 1>} : vector<8x128xi32>
    %c8_i32 = arith.constant 8 : i32
    %213 = arith.muli %arg0, %c8_i32 : i32
    %214 = vector.broadcast %213 : i32 to vector<8x128xi32>
    %215 = arith.addi %214, %211 : vector<8x128xi32>
    %c128_i32 = arith.constant 128 : i32
    %216 = vector.broadcast %c128_i32 : i32 to vector<8x128xi32>
    %217 = arith.muli %215, %216 : vector<8x128xi32>
    %218 = arith.addi %217, %212 : vector<8x128xi32>
    %c64_i32 = arith.constant 64 : i32
    %219 = vector.broadcast %c64_i32 : i32 to vector<8x128xi32>
    %220 = arith.cmpi slt, %218, %219 : vector<8x128xi32>
    %221 = arith.extui %220 : vector<8x128xi1> to vector<8x128xi32>
    %222 = arith.sitofp %221 : vector<8x128xi32> to vector<8x128xf32>
    %223 = arith.mulf %208, %222 : vector<8x128xf32>
    %224 = vector.shape_cast %223 : vector<8x128xf32> to vector<1x8x128xf32>
    %cst_63 = arith.constant dense<0.000000e+00> : vector<1xf32>
    %225 = vector.multi_reduction <add>, %224, %cst_63 [1, 2] : vector<1x8x128xf32> to vector<1xf32>
    %226 = vector.shape_cast %225 : vector<1xf32> to vector<1x1x1xf32>
    %227 = vector.extract %226[0, 0, 0] : f32 from vector<1x1x1xf32>
    %228 = vector.broadcast %227 : f32 to vector<1x1xf32>
    %c0_64 = arith.constant 0 : index
    %c0_65 = arith.constant 0 : index
    %c0_66 = arith.constant 0 : index
    %229 = vector.load %arg4[%c0_64, %c0_65, %c0_66] : memref<1x1x1xf32, #tpu.memory_space<vmem>>, vector<1x1x1xf32>
    %230 = vector.shape_cast %229 : vector<1x1x1xf32> to vector<1x1xf32>
    %231 = vector.shape_cast %228 : vector<1x1xf32> to vector<1x1x1xf32>
    tpu.vector_store %arg4[%c0_64, %c0_65, %c0_66], %231 {strides = array<i32>} : memref<1x1x1xf32, #tpu.memory_space<vmem>>, vector<1x1x1xf32>,
    %232 = arith.mulf %210, %222 : vector<8x128xf32>
    %233 = vector.shape_cast %232 : vector<8x128xf32> to vector<1x8x128xf32>
    %cst_67 = arith.constant dense<0.000000e+00> : vector<1xf32>
    %234 = vector.multi_reduction <add>, %233, %cst_67 [1, 2] : vector<1x8x128xf32> to vector<1xf32>
    %235 = vector.shape_cast %234 : vector<1xf32> to vector<1x1x1xf32>
    %236 = vector.extract %235[0, 0, 0] : f32 from vector<1x1x1xf32>
    %237 = vector.broadcast %236 : f32 to vector<1x1xf32>
    %c0_68 = arith.constant 0 : index
    %c0_69 = arith.constant 0 : index
    %c0_70 = arith.constant 0 : index
    %238 = vector.load %arg5[%c0_68, %c0_69, %c0_70] : memref<1x1x1xf32, #tpu.memory_space<vmem>>, vector<1x1x1xf32>
    %239 = vector.shape_cast %238 : vector<1x1x1xf32> to vector<1x1xf32>
    %240 = vector.shape_cast %237 : vector<1x1xf32> to vector<1x1x1xf32>
    tpu.vector_store %arg5[%c0_68, %c0_69, %c0_70], %240 {strides = array<i32>} : memref<1x1x1xf32, #tpu.memory_space<vmem>>, vector<1x1x1xf32>,
    return
  }
  func.func @transform_0(%arg0: i32) -> i32 {
    %c0_i32 = arith.constant 0 : i32
    %c0_i32_0 = arith.constant 0 : i32
    return %c0_i32 : i32
  }
  func.func @transform_1(%arg0: i32) -> (i32, i32, i32) {
    %c0_i32 = arith.constant 0 : i32
    %c0_i32_0 = arith.constant 0 : i32
    %c0_i32_1 = arith.constant 0 : i32
    return %c0_i32, %arg0, %c0_i32_0 : i32, i32, i32
  }
  func.func @transform_2(%arg0: i32) -> (i32, i32, i32) {
    %c0_i32 = arith.constant 0 : i32
    %c0_i32_0 = arith.constant 0 : i32
    %c0_i32_1 = arith.constant 0 : i32
    return %c0_i32, %arg0, %c0_i32_0 : i32, i32, i32
  }
  func.func @transform_3(%arg0: i32) -> (i32, i32, i32) {
    %c0_i32 = arith.constant 0 : i32
    %c0_i32_0 = arith.constant 0 : i32
    %c0_i32_1 = arith.constant 0 : i32
    return %arg0, %c0_i32, %c0_i32_0 : i32, i32, i32
  }
  func.func @transform_4(%arg0: i32) -> (i32, i32, i32) {
    %c0_i32 = arith.constant 0 : i32
    %c0_i32_0 = arith.constant 0 : i32
    %c0_i32_1 = arith.constant 0 : i32
    return %arg0, %c0_i32, %c0_i32_0 : i32, i32, i32
  }
}

</mosaic_0001>

<llo_original>
// kernel: tpu_custom_call.1
$region0: #{tpu_custom_call.1}
  #allocation0 [shape = 'u32[]', space=smem, size = 0x4, offset = 0x4, fixed_abs, tag = 'smem constant byte address 0x4 - core index']
  #allocation1 [shape = 'u32[72,128]{1,0:T(1,128)}', space=vmem, size = 0x9000, scoped, tag = 'internal scratch']
  %s0 = inlined_call_operand.hbm [shape: f32[32], index: 0, kind: input, shape index: {}]
  %s1 = inlined_call_operand.hbm [shape: f32[9,8,128], index: 1, kind: input, shape index: {}]
  %s2 = inlined_call_operand.hbm [shape: f32[12,8,128], index: 2, kind: output, shape index: {0}]
  %s3 = inlined_call_operand.hbm [shape: f32[1,1,1], index: 3, kind: output, shape index: {1}]
  %s4 = inlined_call_operand.hbm [shape: f32[1,1,1], index: 4, kind: output, shape index: {2}]
  %5 = xla_tuple %s2, %s3, %s4
  %s6 = sld [smem:[#allocation0]]
  $region42: #{tpu_custom_call.1} parent=0
    _
  %s8 = ssub.s32 1, %s6
  %s9 = scalar_select 0, %s8, %s6
  $region1: #{tpu_custom_call.1} parent=0
    #allocation2 [shape = 'u8[512]{0}', space=smem, size = 0x200, scoped, tag = 'input window, operand 0, single buffered']
    #allocation3 [shape = 's32[1]{0}', space=sflag, size = 0x4, scoped, tag = 'scoped memory for tpu_custom_call.1']
    #allocation4 [shape = 's32[1]{0}', space=sflag, size = 0x4, scoped, tag = 'scoped memory for tpu_custom_call.1']
    #allocation5 [shape = 's32[1]{0}', space=sflag, size = 0x4, scoped, tag = 'scoped memory for tpu_custom_call.1']
    #allocation6 [shape = 'u8[36864]{0}', space=vmem, size = 0x9000, scoped, tag = 'input window, operand 1, single buffered']
    #allocation7 [shape = 'u8[49152]{0}', space=vmem, size = 0xc000, scoped, tag = 'output window, operand 0, single buffered']
    #allocation8 [shape = 'u8[512]{0}', space=vmem, size = 0x400, scoped, tag = 'output window, operand 1, single buffered']
    #allocation9 [shape = 's32[1]{0}', space=sflag, size = 0x4, scoped, tag = 'scoped memory for tpu_custom_call.1']
    #allocation10 [shape = 'u8[512]{0}', space=vmem, size = 0x400, scoped, tag = 'output window, operand 2, single buffered']
    %10 = vsyncpa [#allocation5], 0
    %11 = vsyncpa [#allocation3], 0
    %12 = vsyncpa [#allocation4], 0
    %13 = vsyncpa [#allocation9], 0
    // Predicated region
    $region2: #{tpu_custom_call.1} parent=1 // pred_check
      _
    $region3: #{tpu_custom_call.1} parent=1 // pred_check_branch
      %15 = sbr.rel (0) target = $region5
    $region4: #{tpu_custom_call.1} parent=1 // pred_region
      %17 = vsyncadd [#allocation5], 0
      %s19 = sshll.u32 %s0, 4
      %s20 = int_to_ptr.hbm [resolvable:$true] %s19
      %22 = dma.hbm_to_smem %s20, 16, [#allocation2], [#allocation5]
    $region5: #{tpu_custom_call.1} parent=1 // pred_fallthru
      _
    // Predicated region
    $region6: #{tpu_custom_call.1} parent=1 // pred_check
      _
    $region7: #{tpu_custom_call.1} parent=1 // pred_check_branch
      %24 = sbr.rel (0) target = $region9
    $region8: #{tpu_custom_call.1} parent=1 // pred_region
      %26 = vsyncadd [#allocation3], 0
      %s27 = sshll.u32 %s1, 4
      %s28 = int_to_ptr.hbm [resolvable:$true] %s27
      %s29 = sshll.u32 [#allocation6], 4
      %s30 = int_to_ptr.vmem [resolvable:$true] %s29
      %35 = dma.hbm_to_vmem [thread:$0]  %s28, 1152, %s30, [#allocation3], 128, 128, 8
    $region9: #{tpu_custom_call.1} parent=1 // pred_fallthru
      _
    // Predicated region
    $region10: #{tpu_custom_call.1} parent=1 // pred_check
      _
    $region11: #{tpu_custom_call.1} parent=1 // pred_check_branch
      %37 = sbr.rel (0) target = $region13
    $region12: #{tpu_custom_call.1} parent=1 // pred_region
      %39 = dma.done [#allocation5], 16
    $region13: #{tpu_custom_call.1} parent=1 // pred_fallthru
      _
    // Predicated region
    $region14: #{tpu_custom_call.1} parent=1 // pred_check
      _
    $region15: #{tpu_custom_call.1} parent=1 // pred_check_branch
      %41 = sbr.rel (0) target = $region17
    $region16: #{tpu_custom_call.1} parent=1 // pred_region
      %43 = dma.done [#allocation3], 1152
    $region17: #{tpu_custom_call.1} parent=1 // pred_fallthru
      _
    %44 = sfence
    %v45 = vld [vmem:[#allocation6] sm:$0xff]
    %s46 = scalar_lea.vmem [#allocation6], 8
    %v47 = vld [vmem:[%s46] sm:$0xff]
    %s48 = scalar_lea.vmem [#allocation6], 16
    %v49 = vld [vmem:[%s48] sm:$0xff]
    %s50 = scalar_lea.vmem [#allocation6], 24
    %v51 = vld [vmem:[%s50] sm:$0xff]
    %s52 = scalar_lea.vmem [#allocation6], 32
    %v53 = vld [vmem:[%s52] sm:$0xff]
    %s54 = scalar_lea.vmem [#allocation6], 40
    %v55 = vld [vmem:[%s54] sm:$0xff]
    %s56 = scalar_lea.vmem [#allocation6], 48
    %v57 = vld [vmem:[%s56] sm:$0xff]
    %s58 = scalar_lea.vmem [#allocation6], 56
    %v59 = vld [vmem:[%s58] sm:$0xff]
    %s60 = scalar_lea.vmem [#allocation6], 64
    %v61 = vld [vmem:[%s60] sm:$0xff]
    %v62 = vmul.f32 %v61, %v61
    %v63 = vsub.f32 1.0, %v62
    %v64 = vrsqrt.pop %v63
    %v65 = vmul.f32 %v64, %v63
    %v66 = vmul.f32 %v65, %v64
    %v67 = vmul.f32 0.5, %v66
    %v68 = vsub.f32 1.5, %v67
    %v69 = vmul.f32 %v64, %v68
    %v70 = vmul.f32 %v63, %v69
    %vm71 = vcmp.eq.f32.partialorder %v63, inf
    %v72 = vsel %vm71, %v63, %v70
    %vm73 = vcmp.eq.f32.partialorder %v63, 0.0
    %v74 = vand.u32 %v63, 2147483648
    %v75 = vsel %vm73, %v74, %v72
    %s76 = sld [smem:[#allocation2 + $0x1e]]
    %s77 = sld [smem:[#allocation2 + $0x1f]]
    %s78 = sld [smem:[#allocation2]]
    %v79 = vstv %s78
    %v80 = vmul.f32 %v79, %v51
    %s81 = sld [smem:[#allocation2 + $0x3]]
    %v82 = vstv %s81
    %v83 = vmul.f32 %v82, %v53
    %v84 = vadd.f32 %v80, %v83
    %s85 = sld [smem:[#allocation2 + $0x6]]
    %v86 = vstv %s85
    %v87 = vadd.f32 %v84, %v86
    %v88 = vsub.f32 %v45, %v87
    %v89 = vmul.f32 %v61, %v88
    %v90 = vmul.f32 %v75, %v55
    %v91 = vadd.f32 %v89, %v90
    %92 = vst [vmem:[#allocation7] sm:$0xff] %v87
    %s93 = scalar_lea.vmem [#allocation7], 72
    %94 = vst [vmem:[%s93] sm:$0xff] %v88
    %s95 = sld [smem:[#allocation2 + $0x1]]
    %v96 = vstv %s95
    %v97 = vmul.f32 %v96, %v51
    %s98 = sld [smem:[#allocation2 + $0x4]]
    %v99 = vstv %s98
    %v100 = vmul.f32 %v99, %v53
    %v101 = vadd.f32 %v97, %v100
    %s102 = sld [smem:[#allocation2 + $0x7]]
    %v103 = vstv %s102
    %v104 = vadd.f32 %v101, %v103
    %v105 = vsub.f32 %v47, %v104
    %v106 = vmul.f32 %v61, %v105
    %v107 = vmul.f32 %v75, %v57
    %v108 = vadd.f32 %v106, %v107
    %s109 = scalar_lea.vmem [#allocation7], 8
    %110 = vst [vmem:[%s109] sm:$0xff] %v104
    %s111 = scalar_lea.vmem [#allocation7], 80
    %112 = vst [vmem:[%s111] sm:$0xff] %v105
    %s113 = sld [smem:[#allocation2 + $0x2]]
    %v114 = vstv %s113
    %v115 = vmul.f32 %v114, %v51
    %s116 = sld [smem:[#allocation2 + $0x5]]
    %v117 = vstv %s116
    %v118 = vmul.f32 %v117, %v53
    %v119 = vadd.f32 %v115, %v118
    %s120 = sld [smem:[#allocation2 + $0x8]]
    %v121 = vstv %s120
    %v122 = vadd.f32 %v119, %v121
    %v123 = vsub.f32 %v49, %v122
    %v124 = vmul.f32 %v61, %v123
    %v125 = vmul.f32 %v75, %v59
    %v126 = vadd.f32 %v124, %v125
    %s127 = scalar_lea.vmem [#allocation7], 16
    %128 = vst [vmem:[%s127] sm:$0xff] %v122
    %s129 = scalar_lea.vmem [#allocation7], 88
    %130 = vst [vmem:[%s129] sm:$0xff] %v123
    %s131 = sld [smem:[#allocation2 + $0x9]]
    %v132 = vstv %s131
    %v133 = vmul.f32 %v132, %v91
    %s134 = sld [smem:[#allocation2 + $0xc]]
    %v135 = vstv %s134
    %v136 = vmul.f32 %v135, %v108
    %v137 = vadd.f32 %v133, %v136
    %s138 = sld [smem:[#allocation2 + $0xf]]
    %v139 = vstv %s138
    %v140 = vmul.f32 %v139, %v126
    %v141 = vadd.f32 %v137, %v140
    %s142 = sld [smem:[#allocation2 + $0x12]]
    %v143 = vstv %s142
    %v144 = vmul.f32 %v143, %v51
    %v145 = vadd.f32 %v141, %v144
    %s146 = sld [smem:[#allocation2 + $0x15]]
    %v147 = vstv %s146
    %v148 = vmul.f32 %v147, %v53
    %v149 = vadd.f32 %v145, %v148
    %s150 = sld [smem:[#allocation2 + $0x18]]
    %v151 = vstv %s150
    %v152 = vmul.f32 %v151, %v61
    %v153 = vadd.f32 %v149, %v152
    %s154 = sld [smem:[#allocation2 + $0x1b]]
    %v155 = vstv %s154
    %v156 = vadd.f32 %v153, %v155
    %v157 = vstv %s76
    %v158 = vmul.f32 %v157, %v91
    %v159 = vstv %s77
    %v160 = vmul.f32 %v159, %v156
    %v161 = vsub.f32 %v158, %v160
    %s162 = scalar_lea.vmem [#allocation7], 24
    %163 = vst [vmem:[%s162] sm:$0xff] %v156
    %s164 = scalar_lea.vmem [#allocation7], 48
    %165 = vst [vmem:[%s164] sm:$0xff] %v161
    %v166 = vsub.f32 %v156, %v55
    %v167 = vsub.f32 %v161, %v88
    %v168 = vmul.f32 %v166, %v166
    %v169 = vmul.f32 %v167, %v167
    %s170 = sld [smem:[#allocation2 + $0xa]]
    %v171 = vstv %s170
    %v172 = vmul.f32 %v171, %v91
    %s173 = sld [smem:[#allocation2 + $0xd]]
    %v174 = vstv %s173
    %v175 = vmul.f32 %v174, %v108
    %v176 = vadd.f32 %v172, %v175
    %s177 = sld [smem:[#allocation2 + $0x10]]
    %v178 = vstv %s177
    %v179 = vmul.f32 %v178, %v126
    %v180 = vadd.f32 %v176, %v179
    %s181 = sld [smem:[#allocation2 + $0x13]]
    %v182 = vstv %s181
    %v183 = vmul.f32 %v182, %v51
    %v184 = vadd.f32 %v180, %v183
    %s185 = sld [smem:[#allocation2 + $0x16]]
    %v186 = vstv %s185
    %v187 = vmul.f32 %v186, %v53
    %v188 = vadd.f32 %v184, %v187
    %s189 = sld [smem:[#allocation2 + $0x19]]
    %v190 = vstv %s189
    %v191 = vmul.f32 %v190, %v61
    %v192 = vadd.f32 %v188, %v191
    %s193 = sld [smem:[#allocation2 + $0x1c]]
    %v194 = vstv %s193
    %v195 = vadd.f32 %v192, %v194
    %v196 = vmul.f32 %v157, %v108
    %v197 = vmul.f32 %v159, %v195
    %v198 = vsub.f32 %v196, %v197
    %s199 = scalar_lea.vmem [#allocation7], 32
    %200 = vst [vmem:[%s199] sm:$0xff] %v195
    %s201 = scalar_lea.vmem [#allocation7], 56
    %202 = vst [vmem:[%s201] sm:$0xff] %v198
    %v203 = vsub.f32 %v195, %v57
    %v204 = vsub.f32 %v198, %v105
    %v205 = vmul.f32 %v203, %v203
    %v206 = vmul.f32 %v204, %v204
    %s207 = sld [smem:[#allocation2 + $0xb]]
    %v208 = vstv %s207
    %v209 = vmul.f32 %v208, %v91
    %s210 = sld [smem:[#allocation2 + $0xe]]
    %v211 = vstv %s210
    %v212 = vmul.f32 %v211, %v108
    %v213 = vadd.f32 %v209, %v212
    %s214 = sld [smem:[#allocation2 + $0x11]]
    %v215 = vstv %s214
    %v216 = vmul.f32 %v215, %v126
    %v217 = vadd.f32 %v213, %v216
    %s218 = sld [smem:[#allocation2 + $0x14]]
    %v219 = vstv %s218
    %v220 = vmul.f32 %v219, %v51
    %v221 = vadd.f32 %v217, %v220
    %s222 = sld [smem:[#allocation2 + $0x17]]
    %v223 = vstv %s222
    %v224 = vmul.f32 %v223, %v53
    %v225 = vadd.f32 %v221, %v224
    %s226 = sld [smem:[#allocation2 + $0x1a]]
    %v227 = vstv %s226
    %v228 = vmul.f32 %v227, %v61
    %v229 = vadd.f32 %v225, %v228
    %s230 = sld [smem:[#allocation2 + $0x1d]]
    %v231 = vstv %s230
    %v232 = vadd.f32 %v229, %v231
    %v233 = vmul.f32 %v157, %v126
    %v234 = vmul.f32 %v159, %v232
    %v235 = vsub.f32 %v233, %v234
    %s236 = scalar_lea.vmem [#allocation7], 40
    %237 = vst [vmem:[%s236] sm:$0xff] %v232
    %s238 = scalar_lea.vmem [#allocation7], 64
    %239 = vst [vmem:[%s238] sm:$0xff] %v235
    %v240 = vsub.f32 %v232, %v59
    %v241 = vsub.f32 %v235, %v123
    %v242 = vmul.f32 %v240, %v240
    %v243 = vmul.f32 %v241, %v241
    %v244 = vadd.f32 %v168, %v205
    %v245 = vadd.f32 %v244, %v242
    %v246 = vadd.f32 %v169, %v206
    %v247 = vadd.f32 %v246, %v243
    %v248 = vlaneseq
    %v249 = vshrl.u32 %v248, 7
    %v250 = vlaneseq
    %v251 = vand.u32 %v250, 127
    %s252 = smul.u32 0, 8
    %v253 = vstv %s252
    %v254 = vadd.s32 %v253, %v249
    %v255 = vmul.u32 %v254, 128
    %v256 = vadd.s32 %v255, %v251
    %vm257 = vcmp.lt.s32.totalorder %v256, 64
    %v258 = vsel %vm257, 1, 0
    %v259 = vcvt.s32.f32 %v258
    %v260 = vmul.f32 %v245, %v259
    %261 = vadd.xlane.f32.xlu0 %v260
    %v262 = vpop.xlane.xlu0 %261
    %v263 = vrot.slane %v262, 4
    %v264 = vadd.f32 %v262, %v263
    %v265 = vrot.slane %v264, 2
    %v266 = vadd.f32 %v264, %v265
    %v267 = vrot.slane %v266, 1
    %v268 = vadd.f32 %v266, %v267
    %s269 = vtos %v268
    %v270 = vstv %s269
    %vm271 = vcmask 0
    %272 = vst.msk [vmem:[#allocation8] sm:$0x1] %vm271, %v270
    %v273 = vmul.f32 %v247, %v259
    %274 = vadd.xlane.f32.xlu0 %v273
    %v275 = vpop.xlane.xlu0 %274
    %v276 = vrot.slane %v275, 4
    %v277 = vadd.f32 %v275, %v276
    %v278 = vrot.slane %v277, 2
    %v279 = vadd.f32 %v277, %v278
    %v280 = vrot.slane %v279, 1
    %v281 = vadd.f32 %v279, %v280
    %s282 = vtos %v281
    %v283 = vstv %s282
    %284 = vst.msk [vmem:[#allocation10] sm:$0x1] %vm271, %v283
    // Predicated region
    $region18: #{tpu_custom_call.1} parent=1 // pred_check
      _
    $region19: #{tpu_custom_call.1} parent=1 // pred_check_branch
      %286 = sbr.rel (0) target = $region21
    $region20: #{tpu_custom_call.1} parent=1 // pred_region
      %288 = vsyncadd [#allocation4], 0
      %s289 = sshll.u32 [#allocation7], 4
      %s290 = int_to_ptr.vmem [resolvable:$true] %s289
      %s291 = sshll.u32 %s2, 4
      %s292 = int_to_ptr.hbm [resolvable:$true] %s291
      %297 = dma.vmem_to_hbm [thread:$0]  %s290, 1536, %s292, [#allocation4], 128, 128, 8
    $region21: #{tpu_custom_call.1} parent=1 // pred_fallthru
      _
    // Predicated region
    $region22: #{tpu_custom_call.1} parent=1 // pred_check
      _
    $region23: #{tpu_custom_call.1} parent=1 // pred_check_branch
      %299 = sbr.rel (0) target = $region25
    $region24: #{tpu_custom_call.1} parent=1 // pred_region
      %301 = vsyncadd [#allocation9], 0
      %s303 = sshll.u32 [#allocation8], 4
      %s304 = int_to_ptr.vmem [resolvable:$true] %s303
      %s305 = sshll.u32 %s3, 4
      %s306 = int_to_ptr.hbm [resolvable:$true] %s305
      %308 = dma.vmem_to_hbm [thread:$0]  %s304, 16, %s306, [#allocation9]
    $region25: #{tpu_custom_call.1} parent=1 // pred_fallthru
      _
    // Predicated region
    $region26: #{tpu_custom_call.1} parent=1 // pred_check
      _
    $region27: #{tpu_custom_call.1} parent=1 // pred_check_branch
      %310 = sbr.rel (0) target = $region29
    $region28: #{tpu_custom_call.1} parent=1 // pred_region
      %312 = vsyncadd [#allocation9], 0
      %s314 = sshll.u32 [#allocation10], 4
      %s315 = int_to_ptr.vmem [resolvable:$true] %s314
      %s316 = sshll.u32 %s4, 4
      %s317 = int_to_ptr.hbm [resolvable:$true] %s316
      %319 = dma.vmem_to_hbm [thread:$0]  %s315, 16, %s317, [#allocation9]
    $region29: #{tpu_custom_call.1} parent=1 // pred_fallthru
      _
    // Predicated region
    $region30: #{tpu_custom_call.1} parent=1 // pred_check
      _
    $region31: #{tpu_custom_call.1} parent=1 // pred_check_branch
      %321 = sbr.rel (0) target = $region33
    $region32: #{tpu_custom_call.1} parent=1 // pred_region
      %323 = dma.done [#allocation4], 1536
    $region33: #{tpu_custom_call.1} parent=1 // pred_fallthru
      _
    // Predicated region
    $region34: #{tpu_custom_call.1} parent=1 // pred_check
      _
    $region35: #{tpu_custom_call.1} parent=1 // pred_check_branch
      %325 = sbr.rel (0) target = $region37
    $region36: #{tpu_custom_call.1} parent=1 // pred_region
      %327 = dma.done [#allocation9], 16
    $region37: #{tpu_custom_call.1} parent=1 // pred_fallthru
      _
    // Predicated region
    $region38: #{tpu_custom_call.1} parent=1 // pred_check
      _
    $region39: #{tpu_custom_call.1} parent=1 // pred_check_branch
      %329 = sbr.rel (0) target = $region41
    $region40: #{tpu_custom_call.1} parent=1 // pred_region
      %331 = dma.done [#allocation9], 16
    $region41: #{tpu_custom_call.1} parent=1 // pred_fallthru
      _
    %332 = vsyncpa [#allocation3], 1
    %333 = vsyncpa [#allocation4], 1
    %334 = vsyncpa [#allocation9], 1
    %335 = vsyncpa [#allocation5], 1

</llo_original>
